<compile_context>
chip_gen: v5e
topology: v5e:2x2
jax: 0.10.0
libtpu: 0.0.40
codegen_flags: <defaults>
</compile_context>

<pallas_src>
import functools
import math

import jax
import jax.numpy as jnp
from jax.experimental import pallas as pl
from jax.experimental.pallas import tpu as pltpu


def _round_up(a: int, b: int) -> int:
    return (a + b - 1) // b * b


def _lora_kernel(*refs, scale, has_bias):
    if has_bias:
        x_ref, w_ref, a_ref, b_ref, bias_ref, o_ref, lo_ref = refs
    else:
        x_ref, w_ref, a_ref, b_ref, o_ref, lo_ref = refs
        bias_ref = None

    j = pl.program_id(1)

    # LoRA down-projection (tm, r): computed once per row tile on the first N
    # step, cached in VMEM and reused across all N tiles.  alpha/r is folded
    # in here (once per row tile).  NOTE: valid only because the N axis is the
    # innermost, sequential ("arbitrary") grid axis -- do not reorder the grid
    # or mark N "parallel".
    @pl.when(j == 0)
    def _():
        lo = jnp.dot(x_ref[...], a_ref[...], preferred_element_type=jnp.float32)
        lo_ref[...] = lo * scale

    # Base matmul: (tm, K) x (K, tn) -> (tm, tn), fp32 accumulation on MXU.
    base = jnp.dot(x_ref[...], w_ref[...], preferred_element_type=jnp.float32)
    # LoRA up-projection: (tm, r) x (r, tn) -> (tm, tn).
    lora = jnp.dot(lo_ref[...].astype(b_ref.dtype), b_ref[...],
                   preferred_element_type=jnp.float32)

    out = base + lora
    if has_bias:
        out = out + bias_ref[...].astype(jnp.float32)
    o_ref[...] = out.astype(o_ref.dtype)


def lora_linear(x, weight, bias, lora_down, lora_up, *, r=8, alpha=1.0,
                tm=512, tn=512, compute_dtype=None, out_dtype=None):
    """Fused LoRA linear: x @ W.T + ((x @ A.T) @ B.T) * (alpha/r) + bias.

    x: (..., in_features); weight: (out, in); lora_down: (r, in);
    lora_up: (out, r); bias: (out,) or None.
    compute_dtype=jnp.bfloat16 enables bf16 streaming/MXU with fp32 accum.
    out_dtype controls the output (e.g. bf16 to halve writeback traffic).
    """
    in_features = x.shape[-1]
    out_features = weight.shape[0]
    assert weight.shape == (out_features, in_features)
    assert lora_down.shape == (r, in_features)
    assert lora_up.shape == (out_features, r)

    lead = x.shape[:-1]
    x2 = x.reshape(-1, in_features)
    m = x2.shape[0]

    compute_dtype = jnp.dtype(x.dtype if compute_dtype is None else compute_dtype)
    out_dtype = jnp.dtype(x.dtype if out_dtype is None else out_dtype)
    has_bias = bias is not None

    # --- Weight prep (frozen: transpose/cast/pad once; amortized / folds away
    # under jit with constant weights; precompute offline in deployment). -----
    n_pad = _round_up(out_features, 128)          # lane-dense output tiles
    wt = weight.T.astype(compute_dtype)           # (K, out)
    at = lora_down.T.astype(compute_dtype)        # (K, r)
    bt = lora_up.T.astype(compute_dtype)          # (r, out)
    if n_pad != out_features:
        wt = jnp.pad(wt, ((0, 0), (0, n_pad - out_features)))
        bt = jnp.pad(bt, ((0, 0), (0, n_pad - out_features)))
    bias2 = None
    if has_bias:
        bias2 = bias.astype(jnp.float32).reshape(1, out_features)
        if n_pad != out_features:
            bias2 = jnp.pad(bias2, ((0, 0), (0, n_pad - out_features)))

    x2 = x2.astype(compute_dtype)

    # --- Tile selection -------------------------------------------------------
    tm = max(8, _round_up(min(tm, _round_up(m, 8)), 8))
    # v7x megacore: keep >= 2 row tiles (one per TensorCore) as long as each
    # half-tile stays large enough (>=256 rows) to remain above the W-stream
    # roofline.  v5e/v6e (single TC) just pay one extra cheap grid step.
    if m >= 512 and _round_up(m, tm) // tm == 1:
        tm = _round_up(-(-m // 2), 8)

    tn = min(tn, n_pad)
    tn = max(128, (tn // 128) * 128)
    while n_pad % tn != 0:
        tn -= 128

    # --- VMEM budget, clamped to the chip's capacity (v7x has only 64 MiB) ---
    try:
        vmem_cap = int(pltpu.get_tpu_info().vmem_capacity_bytes)
    except Exception:
        vmem_cap = 64 << 20                       # conservative (v7x) fallback
    vmem_budget = max(24 << 20, vmem_cap - (16 << 20))

    c_item = compute_dtype.itemsize
    o_item = out_dtype.itemsize

    def _est(tm_, tn_):
        e = (2 * tm_ * in_features * c_item       # x tile (double-buffered)
             + 2 * in_features * tn_ * c_item     # W^T tile
             + 2 * in_features * r * c_item       # A^T (full, resident)
             + 2 * r * tn_ * c_item               # B^T tile
             + 2 * tm_ * tn_ * o_item             # output tile
             + tm_ * max(r, 128) * 4)             # lo scratch (lane-padded)
        if has_bias:
            e += 2 * tn_ * 4
        return e

    # Shrink tiles until the K-resident design fits VMEM (see TODO for K-split).
    while _est(tm, tn) > vmem_budget:
        if tm > 8 and (tm >= tn or tn <= 128):
            tm = max(8, _round_up(tm // 2, 8))
        elif tn > 128:
            tn_new = max(128, ((tn // 2) // 128) * 128)
            while n_pad % tn_new != 0:
                tn_new -= 128
            tn = tn_new
        else:
            break

    m_pad = _round_up(m, tm)
    if m_pad != m:
        x2 = jnp.pad(x2, ((0, m_pad - m), (0, 0)))

    grid = (m_pad // tm, n_pad // tn)
    est = _est(tm, tn)
    vmem_limit = int(min(max(est + (4 << 20), 32 << 20), vmem_cap - (8 << 20)))
    vmem_limit = max(vmem_limit, est + (2 << 20))   # never under-provision

    # --- BlockSpecs -----------------------------------------------------------
    in_specs = [
        pl.BlockSpec((tm, in_features), lambda i, j: (i, 0)),   # x (resident over j)
        pl.BlockSpec((in_features, tn), lambda i, j: (0, j)),   # W^T (K, n_pad)
        pl.BlockSpec((in_features, r), lambda i, j: (0, 0)),    # A^T (K, r) resident
        pl.BlockSpec((r, tn), lambda i, j: (0, j)),             # B^T (r, n_pad)
    ]
    inputs = [x2, wt, at, bt]
    if has_bias:
        in_specs.append(pl.BlockSpec((1, tn), lambda i, j: (0, j)))
        inputs.append(bias2)

    kernel = functools.partial(_lora_kernel, scale=float(alpha) / float(r),
                               has_bias=has_bias)

    out = pl.pallas_call(
        kernel,
        out_shape=jax.ShapeDtypeStruct((m_pad, n_pad), out_dtype),
        grid_spec=pltpu.PrefetchScalarGridSpec(
            num_scalar_prefetch=0,
            grid=grid,
            in_specs=in_specs,
            out_specs=pl.BlockSpec((tm, tn), lambda i, j: (i, j)),
            scratch_shapes=[pltpu.VMEM((tm, r), jnp.float32)],   # cached lo
        ),
        compiler_params=pltpu.CompilerParams(
            # N must stay the sequential ("arbitrary") innermost axis: the
            # cached down-projection is written only at j == 0.
            dimension_semantics=("parallel", "arbitrary"),
            vmem_limit_bytes=int(vmem_limit),
        ),
    )(*inputs)

    out = out[:m, :out_features]
    return out.reshape(*lead, out_features)


if __name__ == "__main__":
    # Small GPT2-c_fc-like shapes (scaled down): in=64, out=256 (=4*in), r=8.
    batch, seq = 2, 8
    in_features, out_features, r = 64, 256, 8
    alpha = 1.0

    key = jax.random.PRNGKey(0)
    kx, kw, kb, kd, ku = jax.random.split(key, 5)

    x = jax.random.normal(kx, (batch, seq, in_features), dtype=jnp.float32)

    # Frozen base weights (synthetic, deterministic).
    weight = jax.random.normal(kw, (out_features, in_features), dtype=jnp.float32) * 0.02
    bias = jax.random.normal(kb, (out_features,), dtype=jnp.float32) * 0.02

    # LoRA params: kaiming_uniform_(a=sqrt(5)) on lora_down (matching nn.init).
    a_gain = math.sqrt(5.0)
    bound = math.sqrt(6.0 / ((1.0 + a_gain ** 2) * in_features))
    lora_down = jax.random.uniform(kd, (r, in_features), dtype=jnp.float32,
                                   minval=-bound, maxval=bound)
    # The module initializes lora_up to zeros; use small random values here so
    # the LoRA path is actually exercised by the numerical check.
    lora_up = jax.random.normal(ku, (out_features, r), dtype=jnp.float32) * 0.02

    scale = alpha / r

    def ref_fn(xv, b=bias):
        out = (xv @ weight.T) + ((xv @ lora_down.T) @ lora_up.T) * scale
        return out + b if b is not None else out

    ref = ref_fn(x)

    # 1) fp32 compute path with explicit small tiles -> 2x2 grid (exercises
    #    N-tiling and cached down-projection reuse across N tiles).
    out_fp32 = lora_linear(x, weight, bias, lora_down, lora_up, r=r, alpha=alpha,
                           tm=8, tn=128, compute_dtype=jnp.float32)
    out_fp32 = jax.block_until_ready(out_fp32)
    assert out_fp32.shape == (batch, seq, out_features)
    assert jnp.allclose(out_fp32, ref, atol=5e-3, rtol=5e-3), "fp32 path mismatch"

    # 2) bf16 streaming + bf16 MXU (fp32 accumulation), default tile sizes.
    out_bf16 = lora_linear(x, weight, bias, lora_down, lora_up, r=r, alpha=alpha,
                           compute_dtype=jnp.bfloat16)
    out_bf16 = jax.block_until_ready(out_bf16)
    assert jnp.allclose(out_bf16, ref, atol=3e-2, rtol=3e-2), "bf16 path mismatch"

    # 3) Ragged M (batch*seq not a multiple of the row tile) -> padded tail.
    x_tail = x[:, :seq - 1, :]
    out_tail = lora_linear(x_tail, weight, bias, lora_down, lora_up, r=r, alpha=alpha)
    out_tail = jax.block_until_ready(out_tail)
    assert out_tail.shape == (batch, seq - 1, out_features)
    assert jnp.allclose(out_tail, ref_fn(x_tail), atol=5e-3, rtol=5e-3), "tail mismatch"

    # 4) No-bias path (bias DMA/add elided inside the kernel).
    out_nb = lora_linear(x, weight, None, lora_down, lora_up, r=r, alpha=alpha)
    out_nb = jax.block_until_ready(out_nb)
    assert jnp.allclose(out_nb, ref_fn(x, None), atol=5e-3, rtol=5e-3), "no-bias mismatch"

    # 5) out_features not a multiple of 128 -> wrapper-side padding to lane-dense
    #    tiles, sliced off afterwards.
    out_f2 = 200
    w2 = weight[:out_f2]
    b2 = bias[:out_f2]
    up2 = lora_up[:out_f2]
    out_odd = lora_linear(x, w2, b2, lora_down, up2, r=r, alpha=alpha)
    out_odd = jax.block_until_ready(out_odd)
    ref_odd = (x @ w2.T) + ((x @ lora_down.T) @ up2.T) * scale + b2
    assert out_odd.shape == (batch, seq, out_f2)
    assert jnp.allclose(out_odd, ref_odd, atol=5e-3, rtol=5e-3), "padded-N mismatch"

    print("KERNEL_OK")
</pallas_src>

<mosaic_0001>
module attributes {stable_mosaic.version = 11 : i64} {
  func.func @_lora_kernel(%arg0: i32, %arg1: i32, %arg2: memref<8x64xf32, #tpu.memory_space<vmem>>, %arg3: memref<64x128xf32, #tpu.memory_space<vmem>>, %arg4: memref<64x8xf32, #tpu.memory_space<vmem>>, %arg5: memref<8x128xf32, #tpu.memory_space<vmem>>, %arg6: memref<1x128xf32, #tpu.memory_space<vmem>>, %arg7: memref<8x128xf32, #tpu.memory_space<vmem>>, %arg8: memref<8x8xf32, #tpu.memory_space<vmem>>) attributes {dimension_semantics = [#tpu.dimension_semantics<parallel>, #tpu.dimension_semantics<arbitrary>], iteration_bounds = array<i64: 2, 2>, scalar_prefetch = 0 : i64, scratch_operands = 1 : i64, tpu.core_type = #tpu.core_type<tc>, window_params = [{transform_indices = @transform_0, window_bounds = array<i64: 8, 64>}, {transform_indices = @transform_1, window_bounds = array<i64: 64, 128>}, {pipeline_mode = #tpu.pipeline_mode<synchronous>, transform_indices = @transform_2, window_bounds = array<i64: 64, 8>}, {transform_indices = @transform_3, window_bounds = array<i64: 8, 128>}, {transform_indices = @transform_4, window_bounds = array<i64: 1, 128>}, {transform_indices = @transform_5, window_bounds = array<i64: 8, 128>}]} {
    %c0_i32 = arith.constant 0 : i32
    %0 = arith.cmpi eq, %arg1, %c0_i32 : i32
    %1 = arith.extui %0 : i1 to i32
    %c0_i32_0 = arith.constant 0 : i32
    %2 = arith.cmpi ne, %1, %c0_i32_0 : i32
    scf.if %2 {
      %c0_13 = arith.constant 0 : index
      %c0_14 = arith.constant 0 : index
      %14 = vector.load %arg2[%c0_13, %c0_14] : memref<8x64xf32, #tpu.memory_space<vmem>>, vector<8x64xf32>
      %c0_15 = arith.constant 0 : index
      %c0_16 = arith.constant 0 : index
      %15 = vector.load %arg4[%c0_15, %c0_16] : memref<64x8xf32, #tpu.memory_space<vmem>>, vector<64x8xf32>
      %cst_17 = arith.constant dense<0.000000e+00> : vector<8x8xf32>
      %16 = tpu.matmul %14, %15, %cst_17 {dimension_numbers = #tpu.dot_dimension_numbers<[1], [0], [0], [1], [0, 0, 1, 1], [], []>} : vector<8x64xf32>, vector<64x8xf32>, vector<8x8xf32> -> vector<8x8xf32>
      %cst_18 = arith.constant 1.250000e-01 : f32
      %17 = vector.broadcast %cst_18 : f32 to vector<8x8xf32>
      %18 = arith.mulf %16, %17 : vector<8x8xf32>
      %c0_19 = arith.constant 0 : index
      %c0_20 = arith.constant 0 : index
      %19 = vector.load %arg8[%c0_19, %c0_20] : memref<8x8xf32, #tpu.memory_space<vmem>>, vector<8x8xf32>
      tpu.vector_store %arg8[%c0_19, %c0_20], %18 {strides = array<i32>} : memref<8x8xf32, #tpu.memory_space<vmem>>, vector<8x8xf32>,
    } else {
    }
    %c0 = arith.constant 0 : index
    %c0_1 = arith.constant 0 : index
    %3 = vector.load %arg2[%c0, %c0_1] : memref<8x64xf32, #tpu.memory_space<vmem>>, vector<8x64xf32>
    %c0_2 = arith.constant 0 : index
    %c0_3 = arith.constant 0 : index
    %4 = vector.load %arg3[%c0_2, %c0_3] : memref<64x128xf32, #tpu.memory_space<vmem>>, vector<64x128xf32>
    %cst = arith.constant dense<0.000000e+00> : vector<8x128xf32>
    %5 = tpu.matmul %3, %4, %cst {dimension_numbers = #tpu.dot_dimension_numbers<[1], [0], [0], [1], [0, 0, 1, 1], [], []>} : vector<8x64xf32>, vector<64x128xf32>, vector<8x128xf32> -> vector<8x128xf32>
    %c0_4 = arith.constant 0 : index
    %c0_5 = arith.constant 0 : index
    %6 = vector.load %arg8[%c0_4, %c0_5] : memref<8x8xf32, #tpu.memory_space<vmem>>, vector<8x8xf32>
    %c0_6 = arith.constant 0 : index
    %c0_7 = arith.constant 0 : index
    %7 = vector.load %arg5[%c0_6, %c0_7] : memref<8x128xf32, #tpu.memory_space<vmem>>, vector<8x128xf32>
    %cst_8 = arith.constant dense<0.000000e+00> : vector<8x128xf32>
    %8 = tpu.matmul %6, %7, %cst_8 {dimension_numbers = #tpu.dot_dimension_numbers<[1], [0], [0], [1], [0, 0, 1, 1], [], []>} : vector<8x8xf32>, vector<8x128xf32>, vector<8x128xf32> -> vector<8x128xf32>
    %9 = arith.addf %5, %8 : vector<8x128xf32>
    %c0_9 = arith.constant 0 : index
    %c0_10 = arith.constant 0 : index
    %10 = vector.load %arg6[%c0_9, %c0_10] : memref<1x128xf32, #tpu.memory_space<vmem>>, vector<1x128xf32>
    %11 = vector.broadcast %10 : vector<1x128xf32> to vector<8x128xf32>
    %12 = arith.addf %9, %11 : vector<8x128xf32>
    %c0_11 = arith.constant 0 : index
    %c0_12 = arith.constant 0 : index
    %13 = vector.load %arg7[%c0_11, %c0_12] : memref<8x128xf32, #tpu.memory_space<vmem>>, vector<8x128xf32>
    tpu.vector_store %arg7[%c0_11, %c0_12], %12 {strides = array<i32>} : memref<8x128xf32, #tpu.memory_space<vmem>>, vector<8x128xf32>,
    return
  }
  func.func @transform_0(%arg0: i32, %arg1: i32) -> (i32, i32) {
    %c0_i32 = arith.constant 0 : i32
    %c0_i32_0 = arith.constant 0 : i32
    return %arg0, %c0_i32 : i32, i32
  }
  func.func @transform_1(%arg0: i32, %arg1: i32) -> (i32, i32) {
    %c0_i32 = arith.constant 0 : i32
    %c0_i32_0 = arith.constant 0 : i32
    return %c0_i32, %arg1 : i32, i32
  }
  func.func @transform_2(%arg0: i32, %arg1: i32) -> (i32, i32) {
    %c0_i32 = arith.constant 0 : i32
    %c0_i32_0 = arith.constant 0 : i32
    %c0_i32_1 = arith.constant 0 : i32
    return %c0_i32, %c0_i32_0 : i32, i32
  }
  func.func @transform_3(%arg0: i32, %arg1: i32) -> (i32, i32) {
    %c0_i32 = arith.constant 0 : i32
    %c0_i32_0 = arith.constant 0 : i32
    return %c0_i32, %arg1 : i32, i32
  }
  func.func @transform_4(%arg0: i32, %arg1: i32) -> (i32, i32) {
    %c0_i32 = arith.constant 0 : i32
    %c0_i32_0 = arith.constant 0 : i32
    return %c0_i32, %arg1 : i32, i32
  }
  func.func @transform_5(%arg0: i32, %arg1: i32) -> (i32, i32) {
    %c0_i32 = arith.constant 0 : i32
    return %arg0, %arg1 : i32, i32
  }
}

</mosaic_0001>

<llo_original>
// kernel: tpu_custom_call.1
$region0: #{tpu_custom_call.1}
  #allocation0 [shape = 'u32[]', space=smem, size = 0x4, offset = 0x4, fixed_abs, tag = 'smem constant byte address 0x4 - core index']
  #allocation1 [shape = 'u32[72,128]{1,0:T(1,128)}', space=vmem, size = 0x9000, scoped, tag = 'internal scratch']
  #allocation2 [shape = 'f32[8,8]{1,0:T(8,128)}', space=vmem, size = 0x1000, scoped, tag = 'scratch operand']
  %s0 = inlined_call_operand.vmem [shape: f32[16,64], index: 0, kind: input, shape index: {}]
  %s1 = inlined_call_operand.hbm [shape: f32[64,256], index: 1, kind: input, shape index: {}]
  %s2 = inlined_call_operand.vmem [shape: f32[64,8], index: 2, kind: input, shape index: {}]
  %s3 = inlined_call_operand.vmem [shape: f32[8,256], index: 3, kind: input, shape index: {}]
  %s4 = inlined_call_operand.vmem [shape: f32[1,256], index: 4, kind: input, shape index: {}]
  %s5 = inlined_call_operand.hbm [shape: f32[16,256], index: 5, kind: output, shape index: {}]
  %s6 = sld [smem:[#allocation0]]
  $region61: #{tpu_custom_call.1} parent=0
    _
  %s8 = ssub.s32 1, %s6
  %s9 = scalar_select 0, %s8, %s6
  $region1: #{tpu_custom_call.1} parent=0
    #allocation3 [shape = 'u8[65536]{0}', space=vmem, size = 0x10000, scoped, tag = 'input window, operand 1']
    #allocation4 [shape = 's32[2]{0}', space=sflag, size = 0x8, scoped, tag = 'scoped memory for tpu_custom_call.1']
    #allocation5 [shape = 's32[2]{0}', space=sflag, size = 0x8, scoped, tag = 'scoped memory for tpu_custom_call.1']
    #allocation6 [shape = 'u8[8192]{0}', space=vmem, size = 0x2000, scoped, tag = 'output window, operand 0']
    %10 = vsyncpa [#allocation4], 0
    %s11 = scalar_lea.sflag [#allocation4], 1
    %12 = vsyncpa %s11, 0
    %13 = vsyncpa [#allocation5], 0
    %s14 = scalar_lea.sflag [#allocation5], 1
    %15 = vsyncpa %s14, 0
    loop: start=0, step=1, limit=6
    $region2: #{tpu_custom_call.1} parent=1 // loop_pre_header
      _
    $region3: #{tpu_custom_call.1} parent=1 // loop_header
      %s17 = sphi 0, %s21
      %p18 = scmp.ge.s32.totalorder %s17, 6
      %s24 = sphi 0, %s36
      %s25 = sphi 0, %s32
      %s26 = sphi 0, %s24
      %s27 = sphi 0, %s25
      %s28 = sphi 0, %s26
      %s29 = sphi 0, %s27
      %s39 = sphi 0, %s41
      %s42 = sphi 0, %s39
      %s43 = sphi 0, %s42
      %s59 = sphi 0, %s43
      %s65 = sphi 0, %s67
      %s68 = sphi 0, %s65
      %s69 = sphi 0, %s68
      %s85 = sphi 0, %s69
      %s89 = sphi 0, %s89
      %s91 = sphi 0, %s89
      %s92 = sphi 0, %s91
      %s106 = sphi 0, %s92
      %s112 = sphi 0, %s114
      %s115 = sphi 0, %s112
      %s116 = sphi 0, %s115
      %s132 = sphi 0, %s116
      %s138 = sphi 0, %s140
      %s141 = sphi 0, %s138
      %s142 = sphi 0, %s141
      %s158 = sphi 0, %s142
      %s166 = sphi 0, %s168
      %s169 = sphi 0, %s166
      %s170 = sphi 0, %s169
      %s186 = sphi 0, %s170
    $region4: #{tpu_custom_call.1} parent=1 // loop_header_branch
      %20 = sbr.rel (%p18) target = $region8
    $region5: #{tpu_custom_call.1} parent=1 // loop_body
      %s22 = ssub.s32 %s17, 1
      %s23 = ssub.s32 %s17, 2
      %s30 = sadd.s32 1, %s25
      %p31 = scmp.ge.s32.totalorder %s30, 2
      %s32 = scalar_select %p31, 0, %s30
      %s33 = sadd.s32 1, %s24
      %s34 = scalar_select %p31, %s33, %s24
      %p35 = scmp.ge.s32.totalorder %s34, 2
      %s36 = scalar_select %p35, 0, %s34
      %s37 = ssub.s32 %s24, %s36
      %p38 = scmp.eq.s32.totalorder %s37, 0
      %s40 = sadd.s32 %s39, 1
      %s41 = scalar_select %p38, %s39, %s40
      %p44 = pneg %p38
      %p45 = scmp.eq.s32.totalorder %s17, 3
      %p46 = por %p44, %p45
      %p47 = scmp.ne.s32.totalorder %s39, %s42
      %p48 = scmp.eq.s32.totalorder %s17, 0
      %p49 = por %p47, %p48
      %p50 = scmp.ne.s32.totalorder %s39, %s42
      %p51 = scmp.eq.s32.totalorder %s22, 3
      %p52 = por %p50, %p51
      %p53 = scmp.ne.s32.totalorder %s42, %s43
      %p54 = scmp.eq.s32.totalorder %s22, 0
      %p55 = por %p53, %p54
      %p56 = scmp.ne.s32.totalorder %s42, %s43
      %p57 = scmp.eq.s32.totalorder %s23, 3
      %p58 = por %p56, %p57
      %p60 = scmp.ne.s32.totalorder %s43, %s59
      %p61 = scmp.eq.s32.totalorder %s23, 0
      %p62 = por %p60, %p61
      %s63 = ssub.s32 %s25, %s32
      %p64 = scmp.eq.s32.totalorder %s63, 0
      %s66 = sadd.s32 %s65, 1
      %s67 = scalar_select %p64, %s65, %s66
      %p70 = pneg %p64
      %p71 = scmp.eq.s32.totalorder %s17, 3
      %p72 = por %p70, %p71
      %p73 = scmp.ne.s32.totalorder %s65, %s68
      %p74 = scmp.eq.s32.totalorder %s17, 0
      %p75 = por %p73, %p74
      %p76 = scmp.ne.s32.totalorder %s65, %s68
      %p77 = scmp.eq.s32.totalorder %s22, 3
      %p78 = por %p76, %p77
      %p79 = scmp.ne.s32.totalorder %s68, %s69
      %p80 = scmp.eq.s32.totalorder %s22, 0
      %p81 = por %p79, %p80
      %p82 = scmp.ne.s32.totalorder %s68, %s69
      %p83 = scmp.eq.s32.totalorder %s23, 3
      %p84 = por %p82, %p83
      %p86 = scmp.ne.s32.totalorder %s69, %s85
      %p87 = scmp.eq.s32.totalorder %s23, 0
      %p88 = por %p86, %p87
      %s90 = sadd.s32 %s89, 1
      %p93 = scmp.eq.s32.totalorder %s17, 3
      %p94 = scmp.ne.s32.totalorder %s89, %s91
      %p95 = scmp.eq.s32.totalorder %s17, 0
      %p96 = por %p94, %p95
      %p97 = scmp.ne.s32.totalorder %s89, %s91
      %p98 = scmp.eq.s32.totalorder %s22, 3
      %p99 = por %p97, %p98
      %p100 = scmp.ne.s32.totalorder %s91, %s92
      %p101 = scmp.eq.s32.totalorder %s22, 0
      %p102 = por %p100, %p101
      %p103 = scmp.ne.s32.totalorder %s91, %s92
      %p104 = scmp.eq.s32.totalorder %s23, 3
      %p105 = por %p103, %p104
      %p107 = scmp.ne.s32.totalorder %s92, %s106
      %p108 = scmp.eq.s32.totalorder %s23, 0
      %p109 = por %p107, %p108
      %s110 = ssub.s32 %s25, %s32
      %p111 = scmp.eq.s32.totalorder %s110, 0
      %s113 = sadd.s32 %s112, 1
      %s114 = scalar_select %p111, %s112, %s113
      %p117 = pneg %p111
      %p118 = scmp.eq.s32.totalorder %s17, 3
      %p119 = por %p117, %p118
      %p120 = scmp.ne.s32.totalorder %s112, %s115
      %p121 = scmp.eq.s32.totalorder %s17, 0
      %p122 = por %p120, %p121
      %p123 = scmp.ne.s32.totalorder %s112, %s115
      %p124 = scmp.eq.s32.totalorder %s22, 3
      %p125 = por %p123, %p124
      %p126 = scmp.ne.s32.totalorder %s115, %s116
      %p127 = scmp.eq.s32.totalorder %s22, 0
      %p128 = por %p126, %p127
      %p129 = scmp.ne.s32.totalorder %s115, %s116
      %p130 = scmp.eq.s32.totalorder %s23, 3
      %p131 = por %p129, %p130
      %p133 = scmp.ne.s32.totalorder %s116, %s132
      %p134 = scmp.eq.s32.totalorder %s23, 0
      %p135 = por %p133, %p134
      %s136 = ssub.s32 %s25, %s32
      %p137 = scmp.eq.s32.totalorder %s136, 0
      %s139 = sadd.s32 %s138, 1
      %s140 = scalar_select %p137, %s138, %s139
      %p143 = pneg %p137
      %p144 = scmp.eq.s32.totalorder %s17, 3
      %p145 = por %p143, %p144
      %p146 = scmp.ne.s32.totalorder %s138, %s141
      %p147 = scmp.eq.s32.totalorder %s17, 0
      %p148 = por %p146, %p147
      %p149 = scmp.ne.s32.totalorder %s138, %s141
      %p150 = scmp.eq.s32.totalorder %s22, 3
      %p151 = por %p149, %p150
      %p152 = scmp.ne.s32.totalorder %s141, %s142
      %p153 = scmp.eq.s32.totalorder %s22, 0
      %p154 = por %p152, %p153
      %p155 = scmp.ne.s32.totalorder %s141, %s142
      %p156 = scmp.eq.s32.totalorder %s23, 3
      %p157 = por %p155, %p156
      %p159 = scmp.ne.s32.totalorder %s142, %s158
      %p160 = scmp.eq.s32.totalorder %s23, 0
      %p161 = por %p159, %p160
      %s162 = ssub.s32 %s24, %s36
      %s163 = ssub.s32 %s25, %s32
      %s164 = sor.u32 %s162, %s163
      %p165 = scmp.eq.s32.totalorder %s164, 0
      %s167 = sadd.s32 %s166, 1
      %s168 = scalar_select %p165, %s166, %s167
      %p171 = pneg %p165
      %p172 = scmp.eq.s32.totalorder %s17, 3
      %p173 = por %p171, %p172
      %p174 = scmp.ne.s32.totalorder %s166, %s169
      %p175 = scmp.eq.s32.totalorder %s17, 0
      %p176 = por %p174, %p175
      %p177 = scmp.ne.s32.totalorder %s166, %s169
      %p178 = scmp.eq.s32.totalorder %s22, 3
      %p179 = por %p177, %p178
      %p180 = scmp.ne.s32.totalorder %s169, %s170
      %p181 = scmp.eq.s32.totalorder %s22, 0
      %p182 = por %p180, %p181
      %p183 = scmp.ne.s32.totalorder %s169, %s170
      %p184 = scmp.eq.s32.totalorder %s23, 3
      %p185 = por %p183, %p184
      %p187 = scmp.ne.s32.totalorder %s170, %s186
      %p188 = scmp.eq.s32.totalorder %s23, 0
      %p189 = por %p187, %p188
      %p190 = scmp.le.s32.totalorder 1, %s17
      %p191 = scmp.lt.s32.totalorder %s17, 5
      %p192 = pnand %p190, %p191
      %p193 = pneg %p192
      // Predicated region
      $region9: #{tpu_custom_call.1} parent=5 // pred_check
        _
      $region10: #{tpu_custom_call.1} parent=5 // pred_check_branch
        %195 = sbr.rel (%p192) target = $region12
      $region11: #{tpu_custom_call.1} parent=5 // pred_region
        %s196 = ssub.s32 %s17, 1
        // Predicated region
        $region13: #{tpu_custom_call.1} parent=11 // pred_check
          %p197 = pneg %p102
        $region14: #{tpu_custom_call.1} parent=11 // pred_check_branch
          %199 = sbr.rel (%p197) target = $region16
        $region15: #{tpu_custom_call.1} parent=11 // pred_region
          _
        $region16: #{tpu_custom_call.1} parent=11 // pred_fallthru
          _
      $region12: #{tpu_custom_call.1} parent=5 // pred_fallthru
        _
      %p200 = scmp.lt.s32.totalorder %s17, 4
      // Predicated region
      $region17: #{tpu_custom_call.1} parent=5 // pred_check
        %p201 = pneg %p200
      $region18: #{tpu_custom_call.1} parent=5 // pred_check_branch
        %203 = sbr.rel (%p201) target = $region20
      $region19: #{tpu_custom_call.1} parent=5 // pred_region
        // Predicated region
        $region21: #{tpu_custom_call.1} parent=19 // pred_check
          %p204 = pneg %p49
        $region22: #{tpu_custom_call.1} parent=19 // pred_check_branch
          %206 = sbr.rel (%p204) target = $region24
        $region23: #{tpu_custom_call.1} parent=19 // pred_region
          %p207 = scmp.lt.s32.totalorder %s24, 1
          %s208 = scalar_select %p207, %s24, 1
          %s209 = smul.addr %s208, 8
          %s210 = scalar_lea.vmem %s0, %s209
        $region24: #{tpu_custom_call.1} parent=19 // pred_fallthru
          _
        // Predicated region
        $region25: #{tpu_custom_call.1} parent=19 // pred_check
          %p211 = pneg %p75
        $region26: #{tpu_custom_call.1} parent=19 // pred_check_branch
          %213 = sbr.rel (%p211) target = $region28
        $region27: #{tpu_custom_call.1} parent=19 // pred_region
          %s214 = sand.u32 %s65, 1
          %s215 = scalar_lea.sflag [#allocation4], %s214
          %s216 = sand.u32 %s65, 1
          %s217 = smul.addr %s216, 64
          %s218 = scalar_lea.vmem [#allocation3], %s217
          %220 = vsyncadd %s215, 0
          %s221 = smul.addr %s25, 8
          %s222 = scalar_lea.hbm %s1, %s221
          %s223 = sshll.u32 %s222, 4
          %s224 = int_to_ptr.hbm [resolvable:$true] %s223
          %s225 = sshll.u32 %s218, 4
          %s226 = int_to_ptr.vmem [resolvable:$true] %s225
          %231 = dma.hbm_to_vmem [thread:$0]  %s224, 1024, %s226, %s215, 256, 128, 8
        $region28: #{tpu_custom_call.1} parent=19 // pred_fallthru
          _
        // Predicated region
        $region29: #{tpu_custom_call.1} parent=19 // pred_check
          %p232 = pneg %p122
        $region30: #{tpu_custom_call.1} parent=19 // pred_check_branch
          %234 = sbr.rel (%p232) target = $region32
        $region31: #{tpu_custom_call.1} parent=19 // pred_region
          %p235 = scmp.lt.s32.totalorder %s25, 1
          %s236 = scalar_select %p235, %s25, 1
          %s237 = smul.addr %s236, 8
          %s238 = scalar_lea.vmem %s3, %s237
        $region32: #{tpu_custom_call.1} parent=19 // pred_fallthru
          _
        // Predicated region
        $region33: #{tpu_custom_call.1} parent=19 // pred_check
          %p239 = pneg %p148
        $region34: #{tpu_custom_call.1} parent=19 // pred_check_branch
          %241 = sbr.rel (%p239) target = $region36
        $region35: #{tpu_custom_call.1} parent=19 // pred_region
          %p242 = scmp.lt.s32.totalorder %s25, 1
          %s243 = scalar_select %p242, %s25, 1
          %s244 = scalar_lea.vmem %s4, %s243
        $region36: #{tpu_custom_call.1} parent=19 // pred_fallthru
          _
      $region20: #{tpu_custom_call.1} parent=5 // pred_fallthru
        _
      %p245 = scmp.le.s32.totalorder 1, %s17
      %p246 = scmp.lt.s32.totalorder %s17, 5
      %p247 = pnand %p245, %p246
      %p248 = pneg %p247
      // Predicated region
      $region37: #{tpu_custom_call.1} parent=5 // pred_check
        _
      $region38: #{tpu_custom_call.1} parent=5 // pred_check_branch
        %250 = sbr.rel (%p247) target = $region40
      $region39: #{tpu_custom_call.1} parent=5 // pred_region
        %s251 = ssub.s32 %s17, 1
        %s252 = sand.u32 %s68, 1
        %s253 = scalar_lea.sflag [#allocation4], %s252
        %s254 = sand.u32 %s68, 1
        %s255 = smul.addr %s254, 64
        %s256 = scalar_lea.vmem [#allocation3], %s255
        // Predicated region
        $region41: #{tpu_custom_call.1} parent=39 // pred_check
          %p257 = pneg %p81
        $region42: #{tpu_custom_call.1} parent=39 // pred_check_branch
          %259 = sbr.rel (%p257) target = $region44
        $region43: #{tpu_custom_call.1} parent=39 // pred_region
          %261 = dma.done %s253, 1024
        $region44: #{tpu_custom_call.1} parent=39 // pred_fallthru
          _
        %p262 = scmp.lt.s32.totalorder %s26, 1
        %s263 = scalar_select %p262, %s26, 1
        %s264 = smul.addr %s263, 8
        %s265 = scalar_lea.vmem %s0, %s264
        %p266 = pneg %p55
        %p267 = pneg %p52
        %s268 = sand.u32 %s68, 1
        %s269 = scalar_lea.sflag [#allocation4], %s268
        %s270 = sand.u32 %s68, 1
        %s271 = smul.addr %s270, 64
        %s272 = scalar_lea.vmem [#allocation3], %s271
        %p273 = pneg %p81
        %p274 = pneg %p78
        %p275 = pneg %p102
        %p276 = pneg %p99
        %p277 = scmp.lt.s32.totalorder %s27, 1
        %s278 = scalar_select %p277, %s27, 1
        %s279 = smul.addr %s278, 8
        %s280 = scalar_lea.vmem %s3, %s279
        %p281 = pneg %p128
        %p282 = pneg %p125
        %p283 = scmp.lt.s32.totalorder %s27, 1
        %s284 = scalar_select %p283, %s27, 1
        %s285 = scalar_lea.vmem %s4, %s284
        %p286 = pneg %p154
        %p287 = pneg %p151
        %p288 = pneg %p182
        %p289 = pneg %p179
        %s290 = sand.u32 %s169, 1
        %s291 = scalar_lea.sflag [#allocation5], %s290
        %s292 = sand.u32 %s169, 1
        %s293 = smul.addr %s292, 8
        %s294 = scalar_lea.vmem [#allocation6], %s293
        %p295 = scmp.lt.s32.totalorder %s26, 1
        %s296 = scalar_select %p295, %s26, 1
        %s297 = smul.addr %s296, 8
        %s298 = scalar_lea.vmem %s0, %s297
        %p299 = scmp.lt.s32.totalorder %s27, 1
        %s300 = scalar_select %p299, %s27, 1
        %s301 = smul.addr %s300, 8
        %s302 = scalar_lea.vmem %s3, %s301
        %p303 = scmp.lt.s32.totalorder %s27, 1
        %s304 = scalar_select %p303, %s27, 1
        %s305 = scalar_lea.vmem %s4, %s304
        %p306 = scmp.eq.s32.totalorder %s27, 0
        // Predicated region
        $region45: #{tpu_custom_call.1} parent=39 // pred_check
          %p307 = pneg %p306
        $region46: #{tpu_custom_call.1} parent=39 // pred_check_branch
          %309 = sbr.rel (%p307) target = $region48
        $region47: #{tpu_custom_call.1} parent=39 // pred_region
          %v310 = vld [vmem:[%s298] sm:$0xff]
          %v311 = vld [vmem:[%s2] sm:$0xff]
          %v312 = vld [vmem:[%s2 + $0x8] sm:$0xff]
          %v313 = vld [vmem:[%s2 + $0x10] sm:$0xff]
          %v314 = vld [vmem:[%s2 + $0x18] sm:$0xff]
          %v315 = vld [vmem:[%s2 + $0x20] sm:$0xff]
          %v316 = vld [vmem:[%s2 + $0x28] sm:$0xff]
          %v317 = vld [vmem:[%s2 + $0x30] sm:$0xff]
          %v318 = vld [vmem:[%s2 + $0x38] sm:$0xff]
          %vm319 = vcmask 523264
          %v321 = vsel %vm319, %v310, 0
          %323 = vmatpush.msra.mxu0 0.0
          %324 = vmatpush.msra.mxu0 0.0
          %325 = vmatpush.msra.mxu0 0.0
          %326 = vmatpush.msra.mxu0 0.0
          %327 = vmatpush.msra.mxu0 0.0
          %328 = vmatpush.msra.mxu0 0.0
          %329 = vmatpush.msra.mxu0 0.0
          %330 = vmatpush.msra.mxu0 0.0
          %331 = vmatpush.msra.mxu0 %v318
          %332 = vmatpush.msra.mxu0 %v317
          %333 = vmatpush.msra.mxu0 %v316
          %334 = vmatpush.msra.mxu0 %v315
          %335 = vmatpush.msra.mxu0 %v314
          %336 = vmatpush.msra.mxu0 %v313
          %337 = vmatpush.msra.mxu0 %v312
          %338 = vmatpush.msra.mxu0 %v311
          %339 = vmatmul.f32.gmra.mxu0 %v321
          %v340 = vpop.f32.mrf.mxu0
          %v341 = vadd.f32 0.0, %v340
          %342 = vdwg.mxu0
          %v343 = vmul.f32 %v341, 0.125
          %vm344 = vcmask 64512
          %345 = vst.msk [vmem:[#allocation2] sm:$0xff] %vm344, %v343
        $region48: #{tpu_custom_call.1} parent=39 // pred_fallthru
          _
        %v346 = vld [vmem:[%s298] sm:$0xff]
        %v347 = vld [vmem:[%s256] sm:$0xff]
        %v348 = vld [vmem:[%s256 + $0x8] sm:$0xff]
        %v349 = vld [vmem:[%s256 + $0x10] sm:$0xff]
        %v350 = vld [vmem:[%s256 + $0x18] sm:$0xff]
        %v351 = vld [vmem:[%s256 + $0x20] sm:$0xff]
        %v352 = vld [vmem:[%s256 + $0x28] sm:$0xff]
        %v353 = vld [vmem:[%s256 + $0x30] sm:$0xff]
        %v354 = vld [vmem:[%s256 + $0x38] sm:$0xff]
        %v355 = vld [vmem:[#allocation2] sm:$0xff]
        %v356 = vld [vmem:[%s302] sm:$0xff]
        %vm357 = vcmask 64512
        %v359 = vsel %vm357, %v355, 0
        %361 = vmatpush.msra.mxu0 0.0
        %362 = vmatpush.msra.mxu0 0.0
        %363 = vmatpush.msra.mxu0 0.0
        %364 = vmatpush.msra.mxu0 0.0
        %365 = vmatpush.msra.mxu0 0.0
        %366 = vmatpush.msra.mxu0 0.0
        %367 = vmatpush.msra.mxu0 0.0
        %368 = vmatpush.msra.mxu0 0.0
        %369 = vmatpush.msra.mxu0 0.0
        %370 = vmatpush.msra.mxu0 0.0
        %371 = vmatpush.msra.mxu0 0.0
        %372 = vmatpush.msra.mxu0 0.0
        %373 = vmatpush.msra.mxu0 0.0
        %374 = vmatpush.msra.mxu0 0.0
        %375 = vmatpush.msra.mxu0 0.0
        %376 = vmatpush.msra.mxu0 %v356
        %377 = vmatmul.f32.gmra.mxu0 %v359
        %v378 = vpop.f32.mrf.mxu0
        %v379 = vadd.f32 0.0, %v378
        %380 = vdwg.mxu0
        %vm381 = vcmask 523264
        %v383 = vsel %vm381, %v346, 0
        %385 = vmatpush.msra.mxu0 0.0
        %386 = vmatpush.msra.mxu0 0.0
        %387 = vmatpush.msra.mxu0 0.0
        %388 = vmatpush.msra.mxu0 0.0
        %389 = vmatpush.msra.mxu0 0.0
        %390 = vmatpush.msra.mxu0 0.0
        %391 = vmatpush.msra.mxu0 0.0
        %392 = vmatpush.msra.mxu0 0.0
        %393 = vmatpush.msra.mxu0 %v354
        %394 = vmatpush.msra.mxu0 %v353
        %395 = vmatpush.msra.mxu0 %v352
        %396 = vmatpush.msra.mxu0 %v351
        %397 = vmatpush.msra.mxu0 %v350
        %398 = vmatpush.msra.mxu0 %v349
        %399 = vmatpush.msra.mxu0 %v348
        %400 = vmatpush.msra.mxu0 %v347
        %401 = vmatmul.f32.gmra.mxu0 %v383
        %v402 = vpop.f32.mrf.mxu0
        %v403 = vadd.f32 %v379, %v402
        %404 = vdwg.mxu0
        %v405 = vld [vmem:[%s305] sm:$0x1]
        %v407 = vperm.slane %v405, 0
        %v409 = vadd.f32 %v403, %v407
        %410 = vst [vmem:[%s294] sm:$0xff] %v409
        %s411 = sand.u32 %s169, 1
        %s412 = scalar_lea.sflag [#allocation5], %s411
        %s413 = sand.u32 %s169, 1
        %s414 = smul.addr %s413, 8
        %s415 = scalar_lea.vmem [#allocation6], %s414
        // Predicated region
        $region49: #{tpu_custom_call.1} parent=39 // pred_check
          %p416 = pneg %p179
        $region50: #{tpu_custom_call.1} parent=39 // pred_check_branch
          %418 = sbr.rel (%p416) target = $region52
        $region51: #{tpu_custom_call.1} parent=39 // pred_region
          %420 = vsyncadd %s412, 0
          %s421 = smul.addr %s26, 2
          %s422 = sadd.s32 %s27, %s421
          %s423 = smul.addr %s422, 8
          %s424 = scalar_lea.hbm %s5, %s423
          %s426 = sshll.u32 %s415, 4
          %s427 = int_to_ptr.vmem [resolvable:$true] %s426
          %s428 = sshll.u32 %s424, 4
          %s429 = int_to_ptr.hbm [resolvable:$true] %s428
          %431 = dma.vmem_to_hbm [thread:$0]  %s427, 128, %s429, %s412
        $region52: #{tpu_custom_call.1} parent=39 // pred_fallthru
          _
      $region40: #{tpu_custom_call.1} parent=5 // pred_fallthru
        _
      %p432 = scmp.le.s32.totalorder 2, %s17
      // Predicated region
      $region53: #{tpu_custom_call.1} parent=5 // pred_check
        %p433 = pneg %p432
      $region54: #{tpu_custom_call.1} parent=5 // pred_check_branch
        %435 = sbr.rel (%p433) target = $region56
      $region55: #{tpu_custom_call.1} parent=5 // pred_region
        %s436 = ssub.s32 %s17, 2
        // Predicated region
        $region57: #{tpu_custom_call.1} parent=55 // pred_check
          %p437 = pneg %p185
        $region58: #{tpu_custom_call.1} parent=55 // pred_check_branch
          %439 = sbr.rel (%p437) target = $region60
        $region59: #{tpu_custom_call.1} parent=55 // pred_region
          %s440 = sand.u32 %s170, 1
          %s441 = scalar_lea.sflag [#allocation5], %s440
          %s442 = sand.u32 %s170, 1
          %s443 = smul.addr %s442, 8
          %s444 = scalar_lea.vmem [#allocation6], %s443
          %446 = dma.done %s441, 128
        $region60: #{tpu_custom_call.1} parent=55 // pred_fallthru
          _
      $region56: #{tpu_custom_call.1} parent=5 // pred_fallthru
        _
    $region6: #{tpu_custom_call.1} parent=1 // loop_footer
      %s21 = sadd.s32 1, %s17
    $region7: #{tpu_custom_call.1} parent=1 // loop_footer_branch
      %16 = sbr.rel target = $region3
    $region8: #{tpu_custom_call.1} parent=1 // loop_exit
      _
    %447 = vsyncpa [#allocation4], 1
    %s448 = scalar_lea.sflag [#allocation4], 1
    %449 = vsyncpa %s448, 1
    %450 = vsyncpa [#allocation5], 1
    %s451 = scalar_lea.sflag [#allocation5], 1
    %452 = vsyncpa %s451, 1

</llo_original>
